<compile_context>
chip_gen: v7x
topology: tpu7x:2x2x1
jax: 0.10.0
libtpu: 0.0.40
codegen_flags: <defaults>
</compile_context>

<pallas_src>
import functools

import jax
import jax.numpy as jnp
from jax.experimental import pallas as pl
from jax.experimental.pallas import tpu as pltpu


# --------------------------------------------------------------------------- #
# Pallas kernel: two matmuls + lane-masked dual LayerNorm / L2-normalize,
# all on a VMEM-resident batch tile.  Weights stay resident across the grid.
# --------------------------------------------------------------------------- #
def _cross_modal_kernel(x_ref, w1_ref, w2_ref, p1_ref, p2_ref, out_ref, *,
                        hidden_dim, output_dim):
    f32 = jnp.float32

    def dual_layernorm(x, g, b, half, eps=1e-5):
        # LayerNorm applied independently to lanes [0, half) and [half, 2*half),
        # fully lane-parallel via masking (no lane concat, no sub-lane slicing).
        lane = jax.lax.broadcasted_iota(jnp.int32, x.shape, dimension=1)
        left = lane < half
        inv_n = 1.0 / float(half)
        xl = jnp.where(left, x, 0.0)
        xr = jnp.where(left, 0.0, x)
        mu = jnp.where(left,
                       jnp.sum(xl, axis=-1, keepdims=True) * inv_n,
                       jnp.sum(xr, axis=-1, keepdims=True) * inv_n)
        xc = x - mu
        xcl = jnp.where(left, xc, 0.0)
        xcr = jnp.where(left, 0.0, xc)
        var = jnp.where(left,
                        jnp.sum(xcl * xcl, axis=-1, keepdims=True) * inv_n,
                        jnp.sum(xcr * xcr, axis=-1, keepdims=True) * inv_n)
        return xc * jax.lax.rsqrt(var + eps) * g + b

    def dual_l2norm(x, half, eps=1e-12):
        # F.normalize(x, dim=-1) per half: x / max(||x||, eps) == x * rsqrt(max(ss, eps^2))
        lane = jax.lax.broadcasted_iota(jnp.int32, x.shape, dimension=1)
        left = lane < half
        xl = jnp.where(left, x, 0.0)
        xr = jnp.where(left, 0.0, x)
        ss = jnp.where(left,
                       jnp.sum(xl * xl, axis=-1, keepdims=True),
                       jnp.sum(xr * xr, axis=-1, keepdims=True))
        return x * jax.lax.rsqrt(jnp.maximum(ss, eps * eps))

    x = x_ref[...]            # (TILE_B, image_dim + text_dim)
    p1 = p1_ref[...]          # (3, 2H): [bias; gamma; beta]
    p2 = p2_ref[...]          # (3, 2O): [bias; gamma; beta]

    # Stage 1: fused projections + collapsed cross attention + residual bias.
    s = jnp.dot(x, w1_ref[...], preferred_element_type=f32) + p1[0:1, :]
    s = dual_layernorm(s, p1[1:2, :], p1[2:3, :], hidden_dim)

    # Stage 2: block-diagonal final Linear, then LayerNorm + L2-normalize.
    y = jnp.dot(s, w2_ref[...], preferred_element_type=f32) + p2[0:1, :]
    y = dual_layernorm(y, p2[1:2, :], p2[2:3, :], output_dim)
    out_ref[...] = dual_l2norm(y, output_dim)


# --------------------------------------------------------------------------- #
# Parameter construction (deterministic, shapes mirror the PyTorch __init__).
# Weights are kept in (in_features, out_features) layout; 1-D vectors as (1, d).
# --------------------------------------------------------------------------- #
def init_params(key, image_dim, text_dim, hidden_dim, output_dim):
    ks = list(jax.random.split(key, 16))

    def linear(k, din, dout, scale=0.05):
        kw, kb = jax.random.split(k)
        w = jax.random.normal(kw, (din, dout), jnp.float32) * scale
        b = jax.random.normal(kb, (1, dout), jnp.float32) * scale
        return w, b

    def ln(k, d):
        kg, kb = jax.random.split(k)
        g = 1.0 + 0.1 * jax.random.normal(kg, (1, d), jnp.float32)
        b = 0.1 * jax.random.normal(kb, (1, d), jnp.float32)
        return g, b

    def mha(k, d):
        # PyTorch MultiheadAttention: in_proj_weight (3d, d), in_proj_bias (3d,),
        # out_proj Linear(d, d).  Only the V slice + out_proj affect the output
        # (seq_len == 1 -> softmax == 1), but init the full tensors anyway.
        k1, k2, k3 = jax.random.split(k, 3)
        in_w = jax.random.normal(k1, (3 * d, d), jnp.float32) * 0.05
        in_b = jax.random.normal(k2, (1, 3 * d), jnp.float32) * 0.05
        wo, bo = linear(k3, d, d)
        wv = jnp.transpose(in_w[2 * d:3 * d, :])       # (d, d) in (in, out) layout
        bv = in_b[:, 2 * d:3 * d]                      # (1, d)
        return wv, bv, wo, bo

    p = {}
    p["wi"], p["bi"] = linear(ks[0], image_dim, hidden_dim)
    p["wt"], p["bt"] = linear(ks[1], text_dim, hidden_dim)
    p["wv1"], p["bv1"], p["wo1"], p["bo1"] = mha(ks[2], hidden_dim)
    p["wv2"], p["bv2"], p["wo2"], p["bo2"] = mha(ks[3], hidden_dim)
    p["gin"], p["bin"] = ln(ks[4], hidden_dim)
    p["gtn"], p["btn"] = ln(ks[5], hidden_dim)
    p["wfi"], p["bfi"] = linear(ks[6], hidden_dim, output_dim)
    p["gfi"], p["bfi2"] = ln(ks[7], output_dim)
    p["wft"], p["bft"] = linear(ks[8], hidden_dim, output_dim)
    p["gft"], p["bft2"] = ln(ks[9], output_dim)
    return p


def pack_params(p):
    """Fold the module weights into the 4 packed operands the kernel consumes (exact algebra)."""
    hp = jax.lax.Precision.HIGHEST
    dot = functools.partial(jnp.dot, precision=hp)

    # seq_len == 1  =>  MultiheadAttention(q, kv, kv) == out_proj(value_proj(kv)).
    Wa1 = dot(p["wv1"], p["wo1"]); ba1 = dot(p["bv1"], p["wo1"]) + p["bo1"]   # txt -> img_attn
    Wa2 = dot(p["wv2"], p["wo2"]); ba2 = dot(p["bv2"], p["wo2"]) + p["bo2"]   # img -> txt_attn

    # Stage-1 fused weight over x_cat = [image_emb | text_emb]:
    #   S[:, :H] = img@wi + txt@(wt@Wa1) + (bi + bt@Wa1 + ba1)   (= img_proj + img_attn)
    #   S[:, H:] = img@(wi@Wa2) + txt@wt + (bt + bi@Wa2 + ba2)   (= txt_proj + txt_attn)
    W1 = jnp.concatenate([
        jnp.concatenate([p["wi"], dot(p["wi"], Wa2)], axis=1),   # image rows
        jnp.concatenate([dot(p["wt"], Wa1), p["wt"]], axis=1),   # text rows
    ], axis=0)
    b1 = jnp.concatenate([p["bi"] + dot(p["bt"], Wa1) + ba1,
                          p["bt"] + dot(p["bi"], Wa2) + ba2], axis=1)
    P1 = jnp.concatenate([b1,
                          jnp.concatenate([p["gin"], p["gtn"]], axis=1),
                          jnp.concatenate([p["bin"], p["btn"]], axis=1)], axis=0)

    H, O = p["wfi"].shape
    zero = jnp.zeros((H, O), jnp.float32)
    W2 = jnp.concatenate([
        jnp.concatenate([p["wfi"], zero], axis=1),
        jnp.concatenate([zero, p["wft"]], axis=1)], axis=0)      # block-diagonal (2H, 2O)
    P2 = jnp.concatenate([
        jnp.concatenate([p["bfi"], p["bft"]], axis=1),
        jnp.concatenate([p["gfi"], p["gft"]], axis=1),
        jnp.concatenate([p["bfi2"], p["bft2"]], axis=1)], axis=0)
    return {"W1": W1, "W2": W2, "P1": P1, "P2": P2}


# --------------------------------------------------------------------------- #
# JAX wrapper: batch grid, weights resident, single lane-contiguous output slab.
# --------------------------------------------------------------------------- #
@functools.partial(jax.jit, static_argnames=("hidden_dim", "output_dim", "tile_b"))
def cross_modal_projection_head(image_emb, text_emb, packed, hidden_dim, output_dim,
                                tile_b=8):
    B = image_emb.shape[0]
    x_cat = jnp.concatenate([image_emb, text_emb], axis=1).astype(jnp.float32)
    din = x_cat.shape[1]
    b_pad = tile_b * pl.cdiv(B, tile_b)
    if b_pad != B:
        x_cat = jnp.pad(x_cat, ((0, b_pad - B), (0, 0)))
    h2, o2 = 2 * hidden_dim, 2 * output_dim

    kernel = functools.partial(_cross_modal_kernel,
                               hidden_dim=hidden_dim, output_dim=output_dim)
    out = pl.pallas_call(
        kernel,
        out_shape=jax.ShapeDtypeStruct((b_pad, o2), jnp.float32),
        grid_spec=pltpu.PrefetchScalarGridSpec(
            num_scalar_prefetch=0,
            grid=(b_pad // tile_b,),
            in_specs=[
                pl.BlockSpec((tile_b, din), lambda i: (i, 0)),   # activations: blocked over batch
                pl.BlockSpec((din, h2), lambda i: (0, 0)),       # weights: VMEM-resident
                pl.BlockSpec((h2, o2), lambda i: (0, 0)),
                pl.BlockSpec((3, h2), lambda i: (0, 0)),         # packed bias/gamma/beta (stage 1)
                pl.BlockSpec((3, o2), lambda i: (0, 0)),         # packed bias/gamma/beta (stage 2)
            ],
            out_specs=pl.BlockSpec((tile_b, o2), lambda i: (i, 0)),
        ),
        compiler_params=pltpu.CompilerParams(dimension_semantics=("parallel",)),
    )(x_cat, packed["W1"], packed["W2"], packed["P1"], packed["P2"])

    out = out[:B]
    return out[:, :output_dim], out[:, output_dim:]


# --------------------------------------------------------------------------- #
# Pure-JAX unfused reference (same math as the PyTorch module in eval mode).
# --------------------------------------------------------------------------- #
def _reference(image_emb, text_emb, p):
    hp = jax.lax.Precision.HIGHEST
    def dot(a, b): return jnp.dot(a, b, precision=hp)

    def layernorm(x, g, b, eps=1e-5):
        mu = jnp.mean(x, axis=-1, keepdims=True)
        xc = x - mu
        var = jnp.mean(xc * xc, axis=-1, keepdims=True)
        return xc / jnp.sqrt(var + eps) * g + b

    def l2norm(x, eps=1e-12):
        n = jnp.linalg.norm(x, axis=-1, keepdims=True)
        return x / jnp.maximum(n, eps)

    img_p = dot(image_emb, p["wi"]) + p["bi"]
    txt_p = dot(text_emb, p["wt"]) + p["bt"]
    img_attn = dot(dot(txt_p, p["wv1"]) + p["bv1"], p["wo1"]) + p["bo1"]
    txt_attn = dot(dot(img_p, p["wv2"]) + p["bv2"], p["wo2"]) + p["bo2"]
    img_o = layernorm(img_p + img_attn, p["gin"], p["bin"])
    txt_o = layernorm(txt_p + txt_attn, p["gtn"], p["btn"])
    img_f = layernorm(dot(img_o, p["wfi"]) + p["bfi"], p["gfi"], p["bfi2"])
    txt_f = layernorm(dot(txt_o, p["wft"]) + p["bft"], p["gft"], p["bft2"])
    return l2norm(img_f), l2norm(txt_f)


if __name__ == "__main__":
    # Small, module-consistent sizes (hidden_dim=64 -> 2H=128 lane-full stage-1 slab).
    B, IMAGE_DIM, TEXT_DIM, HIDDEN_DIM, OUTPUT_DIM, NUM_HEADS = 16, 32, 48, 64, 32, 4

    key = jax.random.PRNGKey(0)
    k_img, k_txt, k_par = jax.random.split(key, 3)
    image_emb = jax.random.normal(k_img, (B, IMAGE_DIM), jnp.float32)
    text_emb = jax.random.normal(k_txt, (B, TEXT_DIM), jnp.float32)
    params = init_params(k_par, IMAGE_DIM, TEXT_DIM, HIDDEN_DIM, OUTPUT_DIM)
    packed = pack_params(params)

    img_final, txt_final = cross_modal_projection_head(
        image_emb, text_emb, packed, hidden_dim=HIDDEN_DIM, output_dim=OUTPUT_DIM)
    jax.block_until_ready((img_final, txt_final))

    ref_img, ref_txt = _reference(image_emb, text_emb, params)
    assert img_final.shape == (B, OUTPUT_DIM) and txt_final.shape == (B, OUTPUT_DIM)
    assert jnp.allclose(img_final, ref_img, atol=1e-5, rtol=1e-5), \
        float(jnp.max(jnp.abs(img_final - ref_img)))
    assert jnp.allclose(txt_final, ref_txt, atol=1e-5, rtol=1e-5), \
        float(jnp.max(jnp.abs(txt_final - ref_txt)))

    print("KERNEL_OK")
</pallas_src>

<mosaic_0001>
module attributes {stable_mosaic.version = 11 : i64} {
  func.func @_cross_modal_kernel(%arg0: i32, %arg1: memref<8x80xf32, #tpu.memory_space<vmem>>, %arg2: memref<80x128xf32, #tpu.memory_space<vmem>>, %arg3: memref<128x64xf32, #tpu.memory_space<vmem>>, %arg4: memref<3x128xf32, #tpu.memory_space<vmem>>, %arg5: memref<3x64xf32, #tpu.memory_space<vmem>>, %arg6: memref<8x64xf32, #tpu.memory_space<vmem>>) attributes {dimension_semantics = [#tpu.dimension_semantics<parallel>], iteration_bounds = array<i64: 2>, scalar_prefetch = 0 : i64, scratch_operands = 0 : i64, tpu.core_type = #tpu.core_type<tc>, window_params = [{transform_indices = @transform_0, window_bounds = array<i64: 8, 80>}, {pipeline_mode = #tpu.pipeline_mode<synchronous>, transform_indices = @transform_1, window_bounds = array<i64: 80, 128>}, {pipeline_mode = #tpu.pipeline_mode<synchronous>, transform_indices = @transform_2, window_bounds = array<i64: 128, 64>}, {pipeline_mode = #tpu.pipeline_mode<synchronous>, transform_indices = @transform_3, window_bounds = array<i64: 3, 128>}, {pipeline_mode = #tpu.pipeline_mode<synchronous>, transform_indices = @transform_4, window_bounds = array<i64: 3, 64>}, {transform_indices = @transform_5, window_bounds = array<i64: 8, 64>}]} {
    %c0 = arith.constant 0 : index
    %c0_0 = arith.constant 0 : index
    %0 = vector.load %arg1[%c0, %c0_0] : memref<8x80xf32, #tpu.memory_space<vmem>>, vector<8x80xf32>
    %c0_1 = arith.constant 0 : index
    %c0_2 = arith.constant 0 : index
    %1 = vector.load %arg4[%c0_1, %c0_2] : memref<3x128xf32, #tpu.memory_space<vmem>>, vector<3x128xf32>
    %c0_3 = arith.constant 0 : index
    %c0_4 = arith.constant 0 : index
    %2 = vector.load %arg5[%c0_3, %c0_4] : memref<3x64xf32, #tpu.memory_space<vmem>>, vector<3x64xf32>
    %c0_5 = arith.constant 0 : index
    %c0_6 = arith.constant 0 : index
    %3 = vector.load %arg2[%c0_5, %c0_6] : memref<80x128xf32, #tpu.memory_space<vmem>>, vector<80x128xf32>
    %cst = arith.constant dense<0.000000e+00> : vector<8x128xf32>
    %4 = tpu.matmul %0, %3, %cst {dimension_numbers = #tpu.dot_dimension_numbers<[1], [0], [0], [1], [0, 0, 1, 1], [], []>} : vector<8x80xf32>, vector<80x128xf32>, vector<8x128xf32> -> vector<8x128xf32>
    %5 = vector.extract_strided_slice %1 {offsets = [0, 0], sizes = [1, 128], strides = [1, 1]} : vector<3x128xf32> to vector<1x128xf32>
    %6 = vector.broadcast %5 : vector<1x128xf32> to vector<8x128xf32>
    %7 = arith.addf %4, %6 : vector<8x128xf32>
    %8 = vector.extract_strided_slice %1 {offsets = [1, 0], sizes = [1, 128], strides = [1, 1]} : vector<3x128xf32> to vector<1x128xf32>
    %9 = vector.extract_strided_slice %1 {offsets = [2, 0], sizes = [1, 128], strides = [1, 1]} : vector<3x128xf32> to vector<1x128xf32>
    %10 = tpu.iota {dimensions = array<i32: 1>} : vector<8x128xi32>
    %c64_i32 = arith.constant 64 : i32
    %11 = vector.broadcast %c64_i32 : i32 to vector<8x128xi32>
    %12 = arith.cmpi slt, %10, %11 : vector<8x128xi32>
    %cst_7 = arith.constant 0.000000e+00 : f32
    %13 = vector.broadcast %cst_7 : f32 to vector<8x128xf32>
    %14 = arith.select %12, %7, %13 : vector<8x128xi1>, vector<8x128xf32>
    %cst_8 = arith.constant 0.000000e+00 : f32
    %15 = vector.broadcast %cst_8 : f32 to vector<8x128xf32>
    %16 = arith.select %12, %15, %7 : vector<8x128xi1>, vector<8x128xf32>
    %cst_9 = arith.constant dense<0.000000e+00> : vector<8xf32>
    %17 = vector.multi_reduction <add>, %14, %cst_9 [1] : vector<8x128xf32> to vector<8xf32>
    %18 = vector.shape_cast %17 : vector<8xf32> to vector<8x1xf32>
    %cst_10 = arith.constant 1.562500e-02 : f32
    %19 = vector.broadcast %cst_10 : f32 to vector<8x1xf32>
    %20 = arith.mulf %18, %19 : vector<8x1xf32>
    %cst_11 = arith.constant dense<0.000000e+00> : vector<8xf32>
    %21 = vector.multi_reduction <add>, %16, %cst_11 [1] : vector<8x128xf32> to vector<8xf32>
    %22 = vector.shape_cast %21 : vector<8xf32> to vector<8x1xf32>
    %cst_12 = arith.constant 1.562500e-02 : f32
    %23 = vector.broadcast %cst_12 : f32 to vector<8x1xf32>
    %24 = arith.mulf %22, %23 : vector<8x1xf32>
    %25 = vector.shape_cast %20 : vector<8x1xf32> to vector<8x1xf32>
    %26 = vector.broadcast %25 : vector<8x1xf32> to vector<8x128xf32>
    %27 = vector.shape_cast %24 : vector<8x1xf32> to vector<8x1xf32>
    %28 = vector.broadcast %27 : vector<8x1xf32> to vector<8x128xf32>
    %29 = arith.select %12, %26, %28 : vector<8x128xi1>, vector<8x128xf32>
    %30 = arith.subf %7, %29 : vector<8x128xf32>
    %cst_13 = arith.constant 0.000000e+00 : f32
    %31 = vector.broadcast %cst_13 : f32 to vector<8x128xf32>
    %32 = arith.select %12, %30, %31 : vector<8x128xi1>, vector<8x128xf32>
    %cst_14 = arith.constant 0.000000e+00 : f32
    %33 = vector.broadcast %cst_14 : f32 to vector<8x128xf32>
    %34 = arith.select %12, %33, %30 : vector<8x128xi1>, vector<8x128xf32>
    %35 = arith.mulf %32, %32 : vector<8x128xf32>
    %cst_15 = arith.constant dense<0.000000e+00> : vector<8xf32>
    %36 = vector.multi_reduction <add>, %35, %cst_15 [1] : vector<8x128xf32> to vector<8xf32>
    %37 = vector.shape_cast %36 : vector<8xf32> to vector<8x1xf32>
    %cst_16 = arith.constant 1.562500e-02 : f32
    %38 = vector.broadcast %cst_16 : f32 to vector<8x1xf32>
    %39 = arith.mulf %37, %38 : vector<8x1xf32>
    %40 = arith.mulf %34, %34 : vector<8x128xf32>
    %cst_17 = arith.constant dense<0.000000e+00> : vector<8xf32>
    %41 = vector.multi_reduction <add>, %40, %cst_17 [1] : vector<8x128xf32> to vector<8xf32>
    %42 = vector.shape_cast %41 : vector<8xf32> to vector<8x1xf32>
    %cst_18 = arith.constant 1.562500e-02 : f32
    %43 = vector.broadcast %cst_18 : f32 to vector<8x1xf32>
    %44 = arith.mulf %42, %43 : vector<8x1xf32>
    %45 = vector.shape_cast %39 : vector<8x1xf32> to vector<8x1xf32>
    %46 = vector.broadcast %45 : vector<8x1xf32> to vector<8x128xf32>
    %47 = vector.shape_cast %44 : vector<8x1xf32> to vector<8x1xf32>
    %48 = vector.broadcast %47 : vector<8x1xf32> to vector<8x128xf32>
    %49 = arith.select %12, %46, %48 : vector<8x128xi1>, vector<8x128xf32>
    %cst_19 = arith.constant 9.99999974E-6 : f32
    %50 = vector.broadcast %cst_19 : f32 to vector<8x128xf32>
    %51 = arith.addf %49, %50 : vector<8x128xf32>
    %52 = math.rsqrt %51 : vector<8x128xf32>
    %53 = arith.mulf %30, %52 : vector<8x128xf32>
    %54 = vector.broadcast %8 : vector<1x128xf32> to vector<8x128xf32>
    %55 = arith.mulf %53, %54 : vector<8x128xf32>
    %56 = vector.broadcast %9 : vector<1x128xf32> to vector<8x128xf32>
    %57 = arith.addf %55, %56 : vector<8x128xf32>
    %c0_20 = arith.constant 0 : index
    %c0_21 = arith.constant 0 : index
    %58 = vector.load %arg3[%c0_20, %c0_21] : memref<128x64xf32, #tpu.memory_space<vmem>>, vector<128x64xf32>
    %cst_22 = arith.constant dense<0.000000e+00> : vector<8x64xf32>
    %59 = tpu.matmul %57, %58, %cst_22 {dimension_numbers = #tpu.dot_dimension_numbers<[1], [0], [0], [1], [0, 0, 1, 1], [], []>} : vector<8x128xf32>, vector<128x64xf32>, vector<8x64xf32> -> vector<8x64xf32>
    %60 = vector.extract_strided_slice %2 {offsets = [0, 0], sizes = [1, 64], strides = [1, 1]} : vector<3x64xf32> to vector<1x64xf32>
    %61 = vector.broadcast %60 : vector<1x64xf32> to vector<8x64xf32>
    %62 = arith.addf %59, %61 : vector<8x64xf32>
    %63 = vector.extract_strided_slice %2 {offsets = [1, 0], sizes = [1, 64], strides = [1, 1]} : vector<3x64xf32> to vector<1x64xf32>
    %64 = vector.extract_strided_slice %2 {offsets = [2, 0], sizes = [1, 64], strides = [1, 1]} : vector<3x64xf32> to vector<1x64xf32>
    %65 = tpu.iota {dimensions = array<i32: 1>} : vector<8x64xi32>
    %c32_i32 = arith.constant 32 : i32
    %66 = vector.broadcast %c32_i32 : i32 to vector<8x64xi32>
    %67 = arith.cmpi slt, %65, %66 : vector<8x64xi32>
    %cst_23 = arith.constant 0.000000e+00 : f32
    %68 = vector.broadcast %cst_23 : f32 to vector<8x64xf32>
    %69 = arith.select %67, %62, %68 : vector<8x64xi1>, vector<8x64xf32>
    %cst_24 = arith.constant 0.000000e+00 : f32
    %70 = vector.broadcast %cst_24 : f32 to vector<8x64xf32>
    %71 = arith.select %67, %70, %62 : vector<8x64xi1>, vector<8x64xf32>
    %cst_25 = arith.constant dense<0.000000e+00> : vector<8xf32>
    %72 = vector.multi_reduction <add>, %69, %cst_25 [1] : vector<8x64xf32> to vector<8xf32>
    %73 = vector.shape_cast %72 : vector<8xf32> to vector<8x1xf32>
    %cst_26 = arith.constant 3.125000e-02 : f32
    %74 = vector.broadcast %cst_26 : f32 to vector<8x1xf32>
    %75 = arith.mulf %73, %74 : vector<8x1xf32>
    %cst_27 = arith.constant dense<0.000000e+00> : vector<8xf32>
    %76 = vector.multi_reduction <add>, %71, %cst_27 [1] : vector<8x64xf32> to vector<8xf32>
    %77 = vector.shape_cast %76 : vector<8xf32> to vector<8x1xf32>
    %cst_28 = arith.constant 3.125000e-02 : f32
    %78 = vector.broadcast %cst_28 : f32 to vector<8x1xf32>
    %79 = arith.mulf %77, %78 : vector<8x1xf32>
    %80 = vector.shape_cast %75 : vector<8x1xf32> to vector<8x1xf32>
    %81 = vector.broadcast %80 : vector<8x1xf32> to vector<8x64xf32>
    %82 = vector.shape_cast %79 : vector<8x1xf32> to vector<8x1xf32>
    %83 = vector.broadcast %82 : vector<8x1xf32> to vector<8x64xf32>
    %84 = arith.select %67, %81, %83 : vector<8x64xi1>, vector<8x64xf32>
    %85 = arith.subf %62, %84 : vector<8x64xf32>
    %cst_29 = arith.constant 0.000000e+00 : f32
    %86 = vector.broadcast %cst_29 : f32 to vector<8x64xf32>
    %87 = arith.select %67, %85, %86 : vector<8x64xi1>, vector<8x64xf32>
    %cst_30 = arith.constant 0.000000e+00 : f32
    %88 = vector.broadcast %cst_30 : f32 to vector<8x64xf32>
    %89 = arith.select %67, %88, %85 : vector<8x64xi1>, vector<8x64xf32>
    %90 = arith.mulf %87, %87 : vector<8x64xf32>
    %cst_31 = arith.constant dense<0.000000e+00> : vector<8xf32>
    %91 = vector.multi_reduction <add>, %90, %cst_31 [1] : vector<8x64xf32> to vector<8xf32>
    %92 = vector.shape_cast %91 : vector<8xf32> to vector<8x1xf32>
    %cst_32 = arith.constant 3.125000e-02 : f32
    %93 = vector.broadcast %cst_32 : f32 to vector<8x1xf32>
    %94 = arith.mulf %92, %93 : vector<8x1xf32>
    %95 = arith.mulf %89, %89 : vector<8x64xf32>
    %cst_33 = arith.constant dense<0.000000e+00> : vector<8xf32>
    %96 = vector.multi_reduction <add>, %95, %cst_33 [1] : vector<8x64xf32> to vector<8xf32>
    %97 = vector.shape_cast %96 : vector<8xf32> to vector<8x1xf32>
    %cst_34 = arith.constant 3.125000e-02 : f32
    %98 = vector.broadcast %cst_34 : f32 to vector<8x1xf32>
    %99 = arith.mulf %97, %98 : vector<8x1xf32>
    %100 = vector.shape_cast %94 : vector<8x1xf32> to vector<8x1xf32>
    %101 = vector.broadcast %100 : vector<8x1xf32> to vector<8x64xf32>
    %102 = vector.shape_cast %99 : vector<8x1xf32> to vector<8x1xf32>
    %103 = vector.broadcast %102 : vector<8x1xf32> to vector<8x64xf32>
    %104 = arith.select %67, %101, %103 : vector<8x64xi1>, vector<8x64xf32>
    %cst_35 = arith.constant 9.99999974E-6 : f32
    %105 = vector.broadcast %cst_35 : f32 to vector<8x64xf32>
    %106 = arith.addf %104, %105 : vector<8x64xf32>
    %107 = math.rsqrt %106 : vector<8x64xf32>
    %108 = arith.mulf %85, %107 : vector<8x64xf32>
    %109 = vector.broadcast %63 : vector<1x64xf32> to vector<8x64xf32>
    %110 = arith.mulf %108, %109 : vector<8x64xf32>
    %111 = vector.broadcast %64 : vector<1x64xf32> to vector<8x64xf32>
    %112 = arith.addf %110, %111 : vector<8x64xf32>
    %113 = tpu.iota {dimensions = array<i32: 1>} : vector<8x64xi32>
    %c32_i32_36 = arith.constant 32 : i32
    %114 = vector.broadcast %c32_i32_36 : i32 to vector<8x64xi32>
    %115 = arith.cmpi slt, %113, %114 : vector<8x64xi32>
    %cst_37 = arith.constant 0.000000e+00 : f32
    %116 = vector.broadcast %cst_37 : f32 to vector<8x64xf32>
    %117 = arith.select %115, %112, %116 : vector<8x64xi1>, vector<8x64xf32>
    %cst_38 = arith.constant 0.000000e+00 : f32
    %118 = vector.broadcast %cst_38 : f32 to vector<8x64xf32>
    %119 = arith.select %115, %118, %112 : vector<8x64xi1>, vector<8x64xf32>
    %120 = arith.mulf %117, %117 : vector<8x64xf32>
    %cst_39 = arith.constant dense<0.000000e+00> : vector<8xf32>
    %121 = vector.multi_reduction <add>, %120, %cst_39 [1] : vector<8x64xf32> to vector<8xf32>
    %122 = vector.shape_cast %121 : vector<8xf32> to vector<8x1xf32>
    %123 = arith.mulf %119, %119 : vector<8x64xf32>
    %cst_40 = arith.constant dense<0.000000e+00> : vector<8xf32>
    %124 = vector.multi_reduction <add>, %123, %cst_40 [1] : vector<8x64xf32> to vector<8xf32>
    %125 = vector.shape_cast %124 : vector<8xf32> to vector<8x1xf32>
    %126 = vector.shape_cast %122 : vector<8x1xf32> to vector<8x1xf32>
    %127 = vector.broadcast %126 : vector<8x1xf32> to vector<8x64xf32>
    %128 = vector.shape_cast %125 : vector<8x1xf32> to vector<8x1xf32>
    %129 = vector.broadcast %128 : vector<8x1xf32> to vector<8x64xf32>
    %130 = arith.select %115, %127, %129 : vector<8x64xi1>, vector<8x64xf32>
    %cst_41 = arith.constant 1.000000e-24 : f32
    %131 = vector.broadcast %cst_41 : f32 to vector<8x64xf32>
    %132 = arith.maximumf %130, %131 : vector<8x64xf32>
    %133 = math.rsqrt %132 : vector<8x64xf32>
    %134 = arith.mulf %112, %133 : vector<8x64xf32>
    %c0_42 = arith.constant 0 : index
    %c0_43 = arith.constant 0 : index
    %135 = vector.load %arg6[%c0_42, %c0_43] : memref<8x64xf32, #tpu.memory_space<vmem>>, vector<8x64xf32>
    tpu.vector_store %arg6[%c0_42, %c0_43], %134 {strides = array<i32>} : memref<8x64xf32, #tpu.memory_space<vmem>>, vector<8x64xf32>,
    return
  }
  func.func @transform_0(%arg0: i32) -> (i32, i32) {
    %c0_i32 = arith.constant 0 : i32
    %c0_i32_0 = arith.constant 0 : i32
    return %arg0, %c0_i32 : i32, i32
  }
  func.func @transform_1(%arg0: i32) -> (i32, i32) {
    %c0_i32 = arith.constant 0 : i32
    %c0_i32_0 = arith.constant 0 : i32
    %c0_i32_1 = arith.constant 0 : i32
    return %c0_i32, %c0_i32_0 : i32, i32
  }
  func.func @transform_2(%arg0: i32) -> (i32, i32) {
    %c0_i32 = arith.constant 0 : i32
    %c0_i32_0 = arith.constant 0 : i32
    %c0_i32_1 = arith.constant 0 : i32
    return %c0_i32, %c0_i32_0 : i32, i32
  }
  func.func @transform_3(%arg0: i32) -> (i32, i32) {
    %c0_i32 = arith.constant 0 : i32
    %c0_i32_0 = arith.constant 0 : i32
    %c0_i32_1 = arith.constant 0 : i32
    return %c0_i32, %c0_i32_0 : i32, i32
  }
  func.func @transform_4(%arg0: i32) -> (i32, i32) {
    %c0_i32 = arith.constant 0 : i32
    %c0_i32_0 = arith.constant 0 : i32
    %c0_i32_1 = arith.constant 0 : i32
    return %c0_i32, %c0_i32_0 : i32, i32
  }
  func.func @transform_5(%arg0: i32) -> (i32, i32) {
    %c0_i32 = arith.constant 0 : i32
    %c0_i32_0 = arith.constant 0 : i32
    return %arg0, %c0_i32 : i32, i32
  }
}

</mosaic_0001>

<llo_original>
// kernel: cross_modal_projection_head.1
$region0: #{cross_modal_projection_head.1}
  #allocation0 [shape = 'u32[]', space=smem, size = 0x4, offset = 0x4, fixed_abs, tag = 'smem constant byte address 0x4 - core index']
  #allocation1 [shape = 'u32[144,128]{1,0:T(1,128)}', space=vmem, size = 0x12000, scoped, tag = 'internal scratch']
  %s0 = inlined_call_operand.vmem [shape: f32[16,80], index: 0, kind: input, shape index: {}]
  %s1 = inlined_call_operand.vmem [shape: f32[80,128], index: 1, kind: input, shape index: {}]
  %s2 = inlined_call_operand.vmem [shape: f32[128,64], index: 2, kind: input, shape index: {}]
  %s3 = inlined_call_operand.vmem [shape: f32[3,128], index: 3, kind: input, shape index: {}]
  %s4 = inlined_call_operand.vmem [shape: f32[3,64], index: 4, kind: input, shape index: {}]
  %s5 = inlined_call_operand.vmem [shape: f32[16,64], index: 5, kind: output, shape index: {}]
  %s6 = sld [smem:[#allocation0]]
  $region53: #{cross_modal_projection_head.1} parent=0
    _
  %s8 = ssub.s32 1, %s6
  %s9 = scalar_select 0, %s8, %s6
  loop: start=0, step=1, limit=4
  $region2: #{cross_modal_projection_head.1} parent=0 // loop_pre_header
    _
  $region3: #{cross_modal_projection_head.1} parent=0 // loop_header
    %s11 = sphi 0, %s15
    %p12 = scmp.ge.s32.totalorder %s11, 4
    %s21 = sphi 0, %s23
    %s24 = sphi 0, %s21
    %s25 = sphi 0, %s24
    %s41 = sphi 0, %s25
    %s45 = sphi 0, %s45
    %s47 = sphi 0, %s45
    %s48 = sphi 0, %s47
    %s62 = sphi 0, %s48
    %s66 = sphi 0, %s66
    %s68 = sphi 0, %s66
    %s69 = sphi 0, %s68
    %s83 = sphi 0, %s69
    %s87 = sphi 0, %s87
    %s89 = sphi 0, %s87
    %s90 = sphi 0, %s89
    %s104 = sphi 0, %s90
    %s108 = sphi 0, %s108
    %s110 = sphi 0, %s108
    %s111 = sphi 0, %s110
    %s125 = sphi 0, %s111
    %s131 = sphi 0, %s133
    %s134 = sphi 0, %s131
    %s135 = sphi 0, %s134
    %s151 = sphi 0, %s135
  $region4: #{cross_modal_projection_head.1} parent=0 // loop_header_branch
    %14 = sbr.rel (%p12) target = $region8
  $region5: #{cross_modal_projection_head.1} parent=0 // loop_body
    %s16 = ssub.s32 %s11, 1
    %s17 = ssub.s32 %s11, 2
    %s18 = sadd.s32 %s11, 1
    %s19 = ssub.s32 %s11, %s18
    %p20 = scmp.eq.s32.totalorder %s19, 0
    %s22 = sadd.s32 %s21, 1
    %s23 = scalar_select %p20, %s21, %s22
    %p26 = pneg %p20
    %p27 = scmp.eq.s32.totalorder %s11, 1
    %p28 = por %p26, %p27
    %p29 = scmp.ne.s32.totalorder %s21, %s24
    %p30 = scmp.eq.s32.totalorder %s11, 0
    %p31 = por %p29, %p30
    %p32 = scmp.ne.s32.totalorder %s21, %s24
    %p33 = scmp.eq.s32.totalorder %s16, 1
    %p34 = por %p32, %p33
    %p35 = scmp.ne.s32.totalorder %s24, %s25
    %p36 = scmp.eq.s32.totalorder %s16, 0
    %p37 = por %p35, %p36
    %p38 = scmp.ne.s32.totalorder %s24, %s25
    %p39 = scmp.eq.s32.totalorder %s17, 1
    %p40 = por %p38, %p39
    %p42 = scmp.ne.s32.totalorder %s25, %s41
    %p43 = scmp.eq.s32.totalorder %s17, 0
    %p44 = por %p42, %p43
    %s46 = sadd.s32 %s45, 1
    %p49 = scmp.eq.s32.totalorder %s11, 1
    %p50 = scmp.ne.s32.totalorder %s45, %s47
    %p51 = scmp.eq.s32.totalorder %s11, 0
    %p52 = por %p50, %p51
    %p53 = scmp.ne.s32.totalorder %s45, %s47
    %p54 = scmp.eq.s32.totalorder %s16, 1
    %p55 = por %p53, %p54
    %p56 = scmp.ne.s32.totalorder %s47, %s48
    %p57 = scmp.eq.s32.totalorder %s16, 0
    %p58 = por %p56, %p57
    %p59 = scmp.ne.s32.totalorder %s47, %s48
    %p60 = scmp.eq.s32.totalorder %s17, 1
    %p61 = por %p59, %p60
    %p63 = scmp.ne.s32.totalorder %s48, %s62
    %p64 = scmp.eq.s32.totalorder %s17, 0
    %p65 = por %p63, %p64
    %s67 = sadd.s32 %s66, 1
    %p70 = scmp.eq.s32.totalorder %s11, 1
    %p71 = scmp.ne.s32.totalorder %s66, %s68
    %p72 = scmp.eq.s32.totalorder %s11, 0
    %p73 = por %p71, %p72
    %p74 = scmp.ne.s32.totalorder %s66, %s68
    %p75 = scmp.eq.s32.totalorder %s16, 1
    %p76 = por %p74, %p75
    %p77 = scmp.ne.s32.totalorder %s68, %s69
    %p78 = scmp.eq.s32.totalorder %s16, 0
    %p79 = por %p77, %p78
    %p80 = scmp.ne.s32.totalorder %s68, %s69
    %p81 = scmp.eq.s32.totalorder %s17, 1
    %p82 = por %p80, %p81
    %p84 = scmp.ne.s32.totalorder %s69, %s83
    %p85 = scmp.eq.s32.totalorder %s17, 0
    %p86 = por %p84, %p85
    %s88 = sadd.s32 %s87, 1
    %p91 = scmp.eq.s32.totalorder %s11, 1
    %p92 = scmp.ne.s32.totalorder %s87, %s89
    %p93 = scmp.eq.s32.totalorder %s11, 0
    %p94 = por %p92, %p93
    %p95 = scmp.ne.s32.totalorder %s87, %s89
    %p96 = scmp.eq.s32.totalorder %s16, 1
    %p97 = por %p95, %p96
    %p98 = scmp.ne.s32.totalorder %s89, %s90
    %p99 = scmp.eq.s32.totalorder %s16, 0
    %p100 = por %p98, %p99
    %p101 = scmp.ne.s32.totalorder %s89, %s90
    %p102 = scmp.eq.s32.totalorder %s17, 1
    %p103 = por %p101, %p102
    %p105 = scmp.ne.s32.totalorder %s90, %s104
    %p106 = scmp.eq.s32.totalorder %s17, 0
    %p107 = por %p105, %p106
    %s109 = sadd.s32 %s108, 1
    %p112 = scmp.eq.s32.totalorder %s11, 1
    %p113 = scmp.ne.s32.totalorder %s108, %s110
    %p114 = scmp.eq.s32.totalorder %s11, 0
    %p115 = por %p113, %p114
    %p116 = scmp.ne.s32.totalorder %s108, %s110
    %p117 = scmp.eq.s32.totalorder %s16, 1
    %p118 = por %p116, %p117
    %p119 = scmp.ne.s32.totalorder %s110, %s111
    %p120 = scmp.eq.s32.totalorder %s16, 0
    %p121 = por %p119, %p120
    %p122 = scmp.ne.s32.totalorder %s110, %s111
    %p123 = scmp.eq.s32.totalorder %s17, 1
    %p124 = por %p122, %p123
    %p126 = scmp.ne.s32.totalorder %s111, %s125
    %p127 = scmp.eq.s32.totalorder %s17, 0
    %p128 = por %p126, %p127
    %s129 = ssub.s32 %s11, %s18
    %p130 = scmp.eq.s32.totalorder %s129, 0
    %s132 = sadd.s32 %s131, 1
    %s133 = scalar_select %p130, %s131, %s132
    %p136 = pneg %p130
    %p137 = scmp.eq.s32.totalorder %s11, 1
    %p138 = por %p136, %p137
    %p139 = scmp.ne.s32.totalorder %s131, %s134
    %p140 = scmp.eq.s32.totalorder %s11, 0
    %p141 = por %p139, %p140
    %p142 = scmp.ne.s32.totalorder %s131, %s134
    %p143 = scmp.eq.s32.totalorder %s16, 1
    %p144 = por %p142, %p143
    %p145 = scmp.ne.s32.totalorder %s134, %s135
    %p146 = scmp.eq.s32.totalorder %s16, 0
    %p147 = por %p145, %p146
    %p148 = scmp.ne.s32.totalorder %s134, %s135
    %p149 = scmp.eq.s32.totalorder %s17, 1
    %p150 = por %p148, %p149
    %p152 = scmp.ne.s32.totalorder %s135, %s151
    %p153 = scmp.eq.s32.totalorder %s17, 0
    %p154 = por %p152, %p153
    %p155 = scmp.le.s32.totalorder 1, %s11
    %p156 = scmp.lt.s32.totalorder %s11, 3
    %p157 = pnand %p155, %p156
    %p158 = pneg %p157
    // Predicated region
    $region9: #{cross_modal_projection_head.1} parent=5 // pred_check
      _
    $region10: #{cross_modal_projection_head.1} parent=5 // pred_check_branch
      %160 = sbr.rel (%p157) target = $region12
    $region11: #{cross_modal_projection_head.1} parent=5 // pred_region
      %s161 = ssub.s32 %s11, 1
      // Predicated region
      $region13: #{cross_modal_projection_head.1} parent=11 // pred_check
        %p162 = pneg %p58
      $region14: #{cross_modal_projection_head.1} parent=11 // pred_check_branch
        %164 = sbr.rel (%p162) target = $region16
      $region15: #{cross_modal_projection_head.1} parent=11 // pred_region
        _
      $region16: #{cross_modal_projection_head.1} parent=11 // pred_fallthru
        _
      // Predicated region
      $region17: #{cross_modal_projection_head.1} parent=11 // pred_check
        %p165 = pneg %p79
      $region18: #{cross_modal_projection_head.1} parent=11 // pred_check_branch
        %167 = sbr.rel (%p165) target = $region20
      $region19: #{cross_modal_projection_head.1} parent=11 // pred_region
        _
      $region20: #{cross_modal_projection_head.1} parent=11 // pred_fallthru
        _
      // Predicated region
      $region21: #{cross_modal_projection_head.1} parent=11 // pred_check
        %p168 = pneg %p100
      $region22: #{cross_modal_projection_head.1} parent=11 // pred_check_branch
        %170 = sbr.rel (%p168) target = $region24
      $region23: #{cross_modal_projection_head.1} parent=11 // pred_region
        _
      $region24: #{cross_modal_projection_head.1} parent=11 // pred_fallthru
        _
      // Predicated region
      $region25: #{cross_modal_projection_head.1} parent=11 // pred_check
        %p171 = pneg %p121
      $region26: #{cross_modal_projection_head.1} parent=11 // pred_check_branch
        %173 = sbr.rel (%p171) target = $region28
      $region27: #{cross_modal_projection_head.1} parent=11 // pred_region
        _
      $region28: #{cross_modal_projection_head.1} parent=11 // pred_fallthru
        _
    $region12: #{cross_modal_projection_head.1} parent=5 // pred_fallthru
      _
    %p174 = scmp.lt.s32.totalorder %s11, 2
    // Predicated region
    $region29: #{cross_modal_projection_head.1} parent=5 // pred_check
      %p175 = pneg %p174
    $region30: #{cross_modal_projection_head.1} parent=5 // pred_check_branch
      %177 = sbr.rel (%p175) target = $region32
    $region31: #{cross_modal_projection_head.1} parent=5 // pred_region
      // Predicated region
      $region33: #{cross_modal_projection_head.1} parent=31 // pred_check
        %p178 = pneg %p31
      $region34: #{cross_modal_projection_head.1} parent=31 // pred_check_branch
        %180 = sbr.rel (%p178) target = $region36
      $region35: #{cross_modal_projection_head.1} parent=31 // pred_region
        %p181 = scmp.lt.s32.totalorder %s11, 1
        %s182 = scalar_select %p181, %s11, 1
        %s183 = smul.addr %s182, 8
        %s184 = scalar_lea.vmem %s0, %s183
      $region36: #{cross_modal_projection_head.1} parent=31 // pred_fallthru
        _
    $region32: #{cross_modal_projection_head.1} parent=5 // pred_fallthru
      _
    %p185 = scmp.le.s32.totalorder 1, %s11
    %p186 = scmp.lt.s32.totalorder %s11, 3
    %p187 = pnand %p185, %p186
    %p188 = pneg %p187
    // Predicated region
    $region37: #{cross_modal_projection_head.1} parent=5 // pred_check
      _
    $region38: #{cross_modal_projection_head.1} parent=5 // pred_check_branch
      %190 = sbr.rel (%p187) target = $region40
    $region39: #{cross_modal_projection_head.1} parent=5 // pred_region
      %s191 = ssub.s32 %s11, 1
      %p192 = scmp.lt.s32.totalorder %s16, 1
      %s193 = scalar_select %p192, %s16, 1
      %s194 = smul.addr %s193, 8
      %s195 = scalar_lea.vmem %s0, %s194
      %p196 = pneg %p37
      %p197 = pneg %p34
      %p198 = pneg %p58
      %p199 = pneg %p55
      %p200 = pneg %p79
      %p201 = pneg %p76
      %p202 = pneg %p100
      %p203 = pneg %p97
      %p204 = pneg %p121
      %p205 = pneg %p118
      %p206 = pneg %p147
      %p207 = pneg %p144
      %p208 = scmp.lt.s32.totalorder %s16, 1
      %s209 = scalar_select %p208, %s16, 1
      %s210 = smul.addr %s209, 8
      %s211 = scalar_lea.vmem %s5, %s210
      %p212 = scmp.lt.s32.totalorder %s16, 1
      %s213 = scalar_select %p212, %s16, 1
      %s214 = smul.addr %s213, 8
      %s215 = scalar_lea.vmem %s0, %s214
      %p216 = scmp.lt.s32.totalorder %s16, 1
      %s217 = scalar_select %p216, %s16, 1
      %s218 = smul.addr %s217, 8
      %s219 = scalar_lea.vmem %s5, %s218
      %v220 = vld [vmem:[%s215] sm:$0xff]
      %v221 = vld [vmem:[%s3] sm:$0x7]
      %v222 = vld [vmem:[%s4] sm:$0x7]
      %v223 = vld [vmem:[%s1] sm:$0xff]
      %v224 = vld [vmem:[%s1 + $0x8] sm:$0xff]
      %v225 = vld [vmem:[%s1 + $0x10] sm:$0xff]
      %v226 = vld [vmem:[%s1 + $0x18] sm:$0xff]
      %v227 = vld [vmem:[%s1 + $0x20] sm:$0xff]
      %v228 = vld [vmem:[%s1 + $0x28] sm:$0xff]
      %v229 = vld [vmem:[%s1 + $0x30] sm:$0xff]
      %v230 = vld [vmem:[%s1 + $0x38] sm:$0xff]
      %v231 = vld [vmem:[%s1 + $0x40] sm:$0xff]
      %v232 = vld [vmem:[%s1 + $0x48] sm:$0xff]
      %v233 = vlaneseq
      %v234 = vshrl.u32 %v233, 7
      %v235 = vsub.s32 0, %v234
      %v236 = vrot.slane %v221, %v235
      %vm237 = vcmask 654336
      %v239 = vsel %vm237, %v220, 0
      %241 = vmatprep.subr.mxu0 0.0
      %242 = vmatpush1.msra.mxu0 %v223
      %243 = vmatprep.subr.mxu0 0.0
      %244 = vmatpush1.msra.mxu0 %v224
      %245 = vmatprep.subr.mxu0 0.0
      %246 = vmatpush1.msra.mxu0 %v225
      %247 = vmatprep.subr.mxu0 0.0
      %248 = vmatpush1.msra.mxu0 %v226
      %249 = vmatprep.subr.mxu0 0.0
      %250 = vmatpush1.msra.mxu0 %v227
      %251 = vmatprep.subr.mxu0 0.0
      %252 = vmatpush1.msra.mxu0 %v228
      %253 = vmatprep.subr.mxu0 0.0
      %254 = vmatpush1.msra.mxu0 %v229
      %255 = vmatprep.subr.mxu0 0.0
      %256 = vmatpush1.msra.mxu0 %v230
      %257 = vmatprep.subr.mxu0 0.0
      %258 = vmatpush1.msra.mxu0 %v231
      %259 = vmatprep.subr.mxu0 0.0
      %260 = vmatpush1.msra.mxu0 %v232
      %261 = vmatprep.subr.mxu0 0.0
      %262 = vmatpush1.msra.mxu0 0.0
      %263 = vmatprep.subr.mxu0 0.0
      %264 = vmatpush1.msra.mxu0 0.0
      %265 = vmatprep.subr.mxu0 0.0
      %266 = vmatpush1.msra.mxu0 0.0
      %267 = vmatprep.subr.mxu0 0.0
      %268 = vmatpush1.msra.mxu0 0.0
      %269 = vmatprep.subr.mxu0 0.0
      %270 = vmatpush1.msra.mxu0 0.0
      %271 = vmatprep.subr.mxu0 0.0
      %272 = vmatpush1.msra.mxu0 0.0
      %273 = vmatprep.subr.mxu0 0.0
      %274 = vmatpush1.msra.mxu0 0.0
      %275 = vmatprep.subr.mxu0 0.0
      %276 = vmatpush1.msra.mxu0 0.0
      %277 = vmatprep.subr.mxu0 0.0
      %278 = vmatpush1.msra.mxu0 0.0
      %279 = vmatprep.subr.mxu0 0.0
      %280 = vmatpush1.msra.mxu0 0.0
      %281 = vmatprep.subr.mxu0 0.0
      %282 = vmatpush1.msra.mxu0 0.0
      %283 = vmatprep.subr.mxu0 0.0
      %284 = vmatpush1.msra.mxu0 0.0
      %285 = vmatprep.subr.mxu0 0.0
      %286 = vmatpush1.msra.mxu0 0.0
      %287 = vmatprep.subr.mxu0 0.0
      %288 = vmatpush1.msra.mxu0 0.0
      %289 = vmatprep.subr.mxu0 0.0
      %290 = vmatpush1.msra.mxu0 0.0
      %291 = vmatprep.subr.mxu0 0.0
      %292 = vmatpush1.msra.mxu0 0.0
      %293 = vmatprep.subr.mxu0 0.0
      %294 = vmatpush1.msra.mxu0 0.0
      %295 = vmatprep.subr.mxu0 0.0
      %296 = vmatpush1.msra.mxu0 0.0
      %297 = vmatprep.subr.mxu0 0.0
      %298 = vmatpush1.msra.mxu0 0.0
      %299 = vmatprep.subr.mxu0 0.0
      %300 = vmatpush1.msra.mxu0 0.0
      %301 = vmatprep.subr.mxu0 0.0
      %302 = vmatpush1.msra.mxu0 0.0
      %303 = vmatprep.subr.mxu0 0.0
      %304 = vmatpush1.msra.mxu0 0.0
      %305 = vmatprep.mubr.f32.mxu0 0.0
      %306 = vmatmul.mubr.f32.gmra.mrb[0].mxu0 %v239
      %v307 = vpop.f32.mrb[0].mxu0
      %v308 = vadd.f32 %v236, %v307
      %v309 = vpop.f32.mrb[0].mxu0
      %310 = vdwg.mxu0
      %v311 = vlaneseq
      %v312 = vand.u32 %v311, 127
      %vm313 = vcmp.lt.s32.totalorder %v312, 64
      %v314 = vsel %vm313, %v308, 0.0
      %v315 = vsel %vm313, 0.0, %v308
      %316 = vadd.xlane.f32.xlu0 %v314
      %v317 = vpop.xlane.xlu0 %316
      %v318 = vmul.f32 %v317, 0.015625
      %319 = vadd.xlane.f32.xlu0 %v315
      %v320 = vpop.xlane.xlu0 %319
      %v321 = vmul.f32 %v320, 0.015625
      %v322 = vsel %vm313, %v318, %v321
      %v323 = vsub.f32 %v308, %v322
      %v324 = vsel %vm313, %v323, 0.0
      %v325 = vsel %vm313, 0.0, %v323
      %v326 = vmul.f32 %v324, %v324
      %327 = vadd.xlane.f32.xlu0 %v326
      %v328 = vpop.xlane.xlu0 %327
      %v329 = vmul.f32 %v328, 0.015625
      %v330 = vmul.f32 %v325, %v325
      %331 = vadd.xlane.f32.xlu0 %v330
      %v332 = vpop.xlane.xlu0 %331
      %v333 = vmul.f32 %v332, 0.015625
      %v334 = vsel %vm313, %v329, %v333
      %v335 = vadd.f32 %v334, 1e-05
      %v336 = vrsqrt.pop %v335
      %v337 = vmul.f32 %v323, %v336
      %v338 = vlaneseq
      %v339 = vshrl.u32 %v338, 7
      %v340 = vsub.s32 1, %v339
      %v341 = vrot.slane %v221, %v340
      %v342 = vmul.f32 %v337, %v341
      %v343 = vlaneseq
      %v344 = vshrl.u32 %v343, 7
      %v345 = vsub.s32 2, %v344
      %v346 = vrot.slane %v221, %v345
      %v347 = vadd.f32 %v342, %v346
      %v348 = vld [vmem:[%s2] sm:$0xff]
      %v349 = vld [vmem:[%s2 + $0x8] sm:$0xff]
      %v350 = vld [vmem:[%s2 + $0x10] sm:$0xff]
      %v351 = vld [vmem:[%s2 + $0x18] sm:$0xff]
      %v352 = vld [vmem:[%s2 + $0x20] sm:$0xff]
      %v353 = vld [vmem:[%s2 + $0x28] sm:$0xff]
      %v354 = vld [vmem:[%s2 + $0x30] sm:$0xff]
      %v355 = vld [vmem:[%s2 + $0x38] sm:$0xff]
      %v356 = vld [vmem:[%s2 + $0x40] sm:$0xff]
      %v357 = vld [vmem:[%s2 + $0x48] sm:$0xff]
      %v358 = vld [vmem:[%s2 + $0x50] sm:$0xff]
      %v359 = vld [vmem:[%s2 + $0x58] sm:$0xff]
      %v360 = vld [vmem:[%s2 + $0x60] sm:$0xff]
      %v361 = vld [vmem:[%s2 + $0x68] sm:$0xff]
      %v362 = vld [vmem:[%s2 + $0x70] sm:$0xff]
      %v363 = vld [vmem:[%s2 + $0x78] sm:$0xff]
      %v364 = vlaneseq
      %v365 = vshrl.u32 %v364, 7
      %v366 = vsub.s32 0, %v365
      %v367 = vrot.slane %v222, %v366
      %368 = vmatprep.subr.mxu0 0.0
      %369 = vmatpush1.msra.mxu0 %v348
      %370 = vmatprep.subr.mxu0 0.0
      %371 = vmatpush1.msra.mxu0 %v349
      %372 = vmatprep.subr.mxu0 0.0
      %373 = vmatpush1.msra.mxu0 %v350
      %374 = vmatprep.subr.mxu0 0.0
      %375 = vmatpush1.msra.mxu0 %v351
      %376 = vmatprep.subr.mxu0 0.0
      %377 = vmatpush1.msra.mxu0 %v352
      %378 = vmatprep.subr.mxu0 0.0
      %379 = vmatpush1.msra.mxu0 %v353
      %380 = vmatprep.subr.mxu0 0.0
      %381 = vmatpush1.msra.mxu0 %v354
      %382 = vmatprep.subr.mxu0 0.0
      %383 = vmatpush1.msra.mxu0 %v355
      %384 = vmatprep.subr.mxu0 0.0
      %385 = vmatpush1.msra.mxu0 %v356
      %386 = vmatprep.subr.mxu0 0.0
      %387 = vmatpush1.msra.mxu0 %v357
      %388 = vmatprep.subr.mxu0 0.0
      %389 = vmatpush1.msra.mxu0 %v358
      %390 = vmatprep.subr.mxu0 0.0
      %391 = vmatpush1.msra.mxu0 %v359
      %392 = vmatprep.subr.mxu0 0.0
      %393 = vmatpush1.msra.mxu0 %v360
      %394 = vmatprep.subr.mxu0 0.0
      %395 = vmatpush1.msra.mxu0 %v361
      %396 = vmatprep.subr.mxu0 0.0
      %397 = vmatpush1.msra.mxu0 %v362
      %398 = vmatprep.subr.mxu0 0.0
      %399 = vmatpush1.msra.mxu0 %v363
      %400 = vmatprep.subr.mxu0 0.0
      %401 = vmatpush1.msra.mxu0 0.0
      %402 = vmatprep.subr.mxu0 0.0
      %403 = vmatpush1.msra.mxu0 0.0
      %404 = vmatprep.subr.mxu0 0.0
      %405 = vmatpush1.msra.mxu0 0.0
      %406 = vmatprep.subr.mxu0 0.0
      %407 = vmatpush1.msra.mxu0 0.0
      %408 = vmatprep.subr.mxu0 0.0
      %409 = vmatpush1.msra.mxu0 0.0
      %410 = vmatprep.subr.mxu0 0.0
      %411 = vmatpush1.msra.mxu0 0.0
      %412 = vmatprep.subr.mxu0 0.0
      %413 = vmatpush1.msra.mxu0 0.0
      %414 = vmatprep.subr.mxu0 0.0
      %415 = vmatpush1.msra.mxu0 0.0
      %416 = vmatprep.subr.mxu0 0.0
      %417 = vmatpush1.msra.mxu0 0.0
      %418 = vmatprep.subr.mxu0 0.0
      %419 = vmatpush1.msra.mxu0 0.0
      %420 = vmatprep.subr.mxu0 0.0
      %421 = vmatpush1.msra.mxu0 0.0
      %422 = vmatprep.subr.mxu0 0.0
      %423 = vmatpush1.msra.mxu0 0.0
      %424 = vmatprep.subr.mxu0 0.0
      %425 = vmatpush1.msra.mxu0 0.0
      %426 = vmatprep.subr.mxu0 0.0
      %427 = vmatpush1.msra.mxu0 0.0
      %428 = vmatprep.subr.mxu0 0.0
      %429 = vmatpush1.msra.mxu0 0.0
      %430 = vmatprep.subr.mxu0 0.0
      %431 = vmatpush1.msra.mxu0 0.0
      %432 = vmatprep.mubr.f32.mxu0 0.0
      %433 = vmatmul.mubr.f32.gmra.mrb[0].mxu0 %v347
      %v434 = vpop.f32.mrb[0].mxu0
      %v435 = vadd.f32 %v367, %v434
      %v436 = vpop.f32.mrb[0].mxu0
      %437 = vdwg.mxu0
      %vm438 = vcmp.lt.s32.totalorder %v312, 32
      %v439 = vsel %vm438, %v435, 0.0
      %v440 = vsel %vm438, 0.0, %v435
      %vm441 = vcmask 523264
      %v442 = vsel %vm441, %v439, 0.0
      %443 = vadd.xlane.f32.xlu0 %v442
      %v444 = vpop.xlane.xlu0 %443
      %v445 = vmul.f32 %v444, 0.03125
      %v446 = vsel %vm441, %v440, 0.0
      %447 = vadd.xlane.f32.xlu0 %v446
      %v448 = vpop.xlane.xlu0 %447
      %v449 = vmul.f32 %v448, 0.03125
      %v450 = vsel %vm438, %v445, %v449
      %v451 = vsub.f32 %v435, %v450
      %v452 = vsel %vm438, %v451, 0.0
      %v453 = vsel %vm438, 0.0, %v451
      %v454 = vmul.f32 %v452, %v452
      %v455 = vsel %vm441, %v454, 0.0
      %456 = vadd.xlane.f32.xlu0 %v455
      %v457 = vpop.xlane.xlu0 %456
      %v458 = vmul.f32 %v457, 0.03125
      %v459 = vmul.f32 %v453, %v453
      %v460 = vsel %vm441, %v459, 0.0
      %461 = vadd.xlane.f32.xlu0 %v460
      %v462 = vpop.xlane.xlu0 %461
      %v463 = vmul.f32 %v462, 0.03125
      %v464 = vsel %vm438, %v458, %v463
      %v465 = vadd.f32 %v464, 1e-05
      %v466 = vrsqrt.pop %v465
      %v467 = vmul.f32 %v451, %v466
      %v468 = vlaneseq
      %v469 = vshrl.u32 %v468, 7
      %v470 = vsub.s32 1, %v469
      %v471 = vrot.slane %v222, %v470
      %v472 = vmul.f32 %v467, %v471
      %v473 = vlaneseq
      %v474 = vshrl.u32 %v473, 7
      %v475 = vsub.s32 2, %v474
      %v476 = vrot.slane %v222, %v475
      %v477 = vadd.f32 %v472, %v476
      %v478 = vsel %vm438, %v477, 0.0
      %v479 = vsel %vm438, 0.0, %v477
      %v480 = vmul.f32 %v478, %v478
      %v481 = vsel %vm441, %v480, 0.0
      %482 = vadd.xlane.f32.xlu0 %v481
      %v483 = vpop.xlane.xlu0 %482
      %v484 = vmul.f32 %v479, %v479
      %v485 = vsel %vm441, %v484, 0.0
      %486 = vadd.xlane.f32.xlu0 %v485
      %v487 = vpop.xlane.xlu0 %486
      %v488 = vsel %vm438, %v483, %v487
      %v489 = vmax.f32 %v488, 1e-24
      %v490 = vrsqrt.pop %v489
      %v491 = vmul.f32 %v477, %v490
      %492 = vst.msk [vmem:[%s219] sm:$0xff] %vm441, %v491
      %p493 = scmp.lt.s32.totalorder %s16, 1
      %s494 = scalar_select %p493, %s16, 1
      %s495 = smul.addr %s494, 8
      %s496 = scalar_lea.vmem %s5, %s495
      // Predicated region
      $region41: #{cross_modal_projection_head.1} parent=39 // pred_check
        %p497 = pneg %p144
      $region42: #{cross_modal_projection_head.1} parent=39 // pred_check_branch
        %499 = sbr.rel (%p497) target = $region44
      $region43: #{cross_modal_projection_head.1} parent=39 // pred_region
        _
      $region44: #{cross_modal_projection_head.1} parent=39 // pred_fallthru
        _
    $region40: #{cross_modal_projection_head.1} parent=5 // pred_fallthru
      _
    %p500 = scmp.le.s32.totalorder 2, %s11
    // Predicated region
    $region45: #{cross_modal_projection_head.1} parent=5 // pred_check
      %p501 = pneg %p500
    $region46: #{cross_modal_projection_head.1} parent=5 // pred_check_branch
      %503 = sbr.rel (%p501) target = $region48
    $region47: #{cross_modal_projection_head.1} parent=5 // pred_region
      %s504 = ssub.s32 %s11, 2
      // Predicated region
      $region49: #{cross_modal_projection_head.1} parent=47 // pred_check
        %p505 = pneg %p150
      $region50: #{cross_modal_projection_head.1} parent=47 // pred_check_branch
        %507 = sbr.rel (%p505) target = $region52
      $region51: #{cross_modal_projection_head.1} parent=47 // pred_region
        %p508 = scmp.lt.s32.totalorder %s17, 1
        %s509 = scalar_select %p508, %s17, 1
        %s510 = smul.addr %s509, 8
        %s511 = scalar_lea.vmem %s5, %s510
      $region52: #{cross_modal_projection_head.1} parent=47 // pred_fallthru
        _
    $region48: #{cross_modal_projection_head.1} parent=5 // pred_fallthru
      _
  $region6: #{cross_modal_projection_head.1} parent=0 // loop_footer
    %s15 = sadd.s32 1, %s11
  $region7: #{cross_modal_projection_head.1} parent=0 // loop_footer_branch
    %10 = sbr.rel target = $region3
  $region8: #{cross_modal_projection_head.1} parent=0 // loop_exit
    _

</llo_original>
